<compile_context>
chip_gen: v6e
topology: v6e:2x2x1
jax: 0.10.0
libtpu: 0.0.40
codegen_flags: <defaults>
</compile_context>

<pallas_src>
import jax
import jax.numpy as jnp
from jax.experimental import pallas as pl
from jax.experimental.pallas import tpu as pltpu


def _round_up(x, m):
    return (x + m - 1) // m * m


def _make_kernel(has_mask: bool):
    """Returns a kernel closed over the (static) has_mask flag."""

    def kernel(*refs):
        if has_mask:
            tok_ref, mask_ref = refs[0], refs[1]
            (emb_ref, w1_ref, b1_ref, w2_ref, b2_ref, w3_ref, b3_ref,
             o_ref) = refs[2:]
        else:
            tok_ref = refs[0]
            mask_ref = None
            (emb_ref, w1_ref, b1_ref, w2_ref, b2_ref, w3_ref, b3_ref,
             o_ref) = refs[1:]

        TB, S = tok_ref.shape          # batch tile, sequence length (static)
        Vp = emb_ref.shape[0]          # padded vocab size (static)

        tok = tok_ref[...]                                            # (TB, S) i32
        # Hoisted once: 2-D lane iota over the (padded) vocab axis.
        vocab_iota = jax.lax.broadcasted_iota(jnp.int32, (TB, Vp), 1)

        # ---- fused embedding gather + pooling ----------------------------
        # a[b, v] = sum_s weight[b, s] * [tok[b, s] == v], accumulated in a
        # single (TB, Vp) f32 buffer (unrolled over tiny static S) — no 3-D
        # one-hot materialization, no vreg spill.
        a = jnp.zeros((TB, Vp), jnp.float32)
        if has_mask:
            m = mask_ref[...]                                         # (TB, S) f32
            for s in range(S):
                hit = tok[:, s:s + 1] == vocab_iota                   # (TB, Vp)
                a = a + jnp.where(hit, m[:, s:s + 1], 0.0)
        else:
            for s in range(S):
                hit = tok[:, s:s + 1] == vocab_iota
                a = a + jnp.where(hit, 1.0, 0.0)

        # One bf16 MXU contraction does the gather + sum over S:
        #   pooled_raw = a @ emb_table        (TB, Vp) @ (Vp, E) -> (TB, E)
        pooled = jnp.dot(a.astype(jnp.bfloat16), emb_ref[...],
                         preferred_element_type=jnp.float32)          # (TB, E) f32

        # Normalization applied once after the matmul (cheapest place).
        if has_mask:
            den = jnp.sum(m, axis=1, keepdims=True)                   # (TB, 1)
            pooled = pooled * pl.reciprocal(den, approx=True)         # EUP slot
        else:
            pooled = pooled * (1.0 / S)

        # ---- MLP: bf16 MXU inputs, f32 accumulate, f32 bias/ReLU (VPU) ----
        h1 = jnp.dot(pooled.astype(jnp.bfloat16), w1_ref[...],
                     preferred_element_type=jnp.float32) + b1_ref[...]
        h1 = jnp.maximum(h1, 0.0)
        h2 = jnp.dot(h1.astype(jnp.bfloat16), w2_ref[...],
                     preferred_element_type=jnp.float32) + b2_ref[...]
        h2 = jnp.maximum(h2, 0.0)
        o_ref[...] = jnp.dot(h2.astype(jnp.bfloat16), w3_ref[...],
                             preferred_element_type=jnp.float32) + b3_ref[...]

    return kernel


def prepare_params(params):
    """One-time padding / bf16 casting of the model parameters.

    Hoisted out of the per-call path: the kernel is a few microseconds, so the
    7+ pad/convert XLA ops must not run on every forward call.
    Returns (padded_tensor_tuple, num_classes).
    """
    emb_w, w1, b1, w2, b2, w3, b3 = params
    V, E = emb_w.shape
    H2 = w1.shape[1]
    H = w2.shape[1]
    C = w3.shape[1]

    # Lane-dense padded sizes: every matmul dim -> multiple of 128
    # (vocab included, since it is the lane axis of `a` / K of the gather matmul).
    Ep = _round_up(E, 128)
    H2p = _round_up(H2, 128)
    Hp = _round_up(H, 128)
    Cp = _round_up(C, 128)
    Vp = _round_up(V, 128)

    f32, bf16 = jnp.float32, jnp.bfloat16
    # Zero padding is inert through matmul / bias / ReLU.
    emb_p = jnp.pad(emb_w.astype(f32), ((0, Vp - V), (0, Ep - E))).astype(bf16)
    w1_p = jnp.pad(w1.astype(f32), ((0, Ep - E), (0, H2p - H2))).astype(bf16)
    w2_p = jnp.pad(w2.astype(f32), ((0, H2p - H2), (0, Hp - H))).astype(bf16)
    w3_p = jnp.pad(w3.astype(f32), ((0, Hp - H), (0, Cp - C))).astype(bf16)
    b1_p = jnp.pad(b1.reshape(1, -1).astype(f32), ((0, 0), (0, H2p - H2)))
    b2_p = jnp.pad(b2.reshape(1, -1).astype(f32), ((0, 0), (0, Hp - H)))
    b3_p = jnp.pad(b3.reshape(1, -1).astype(f32), ((0, 0), (0, Cp - C)))
    tensors = jax.block_until_ready(
        (emb_p, w1_p, b1_p, w2_p, b2_p, w3_p, b3_p))
    return tensors, C


def _pick_batch_tile(B):
    # v7x: make sure there are >= 2 grid steps so both TensorCores get work.
    # v5e/v6e: fatter tiles for big B amortize the ~0.35 us per-step overhead.
    if B <= 128:
        return max(8, _round_up((B + 1) // 2, 8))
    if B <= 512:
        return 128
    return 256


def net_forward(tokens, prepared, mask=None):
    """tokens: (B, S) int32; mask: optional (B, S); returns (B, num_classes) f32."""
    (emb_p, w1_p, b1_p, w2_p, b2_p, w3_p, b3_p), C = prepared
    B, S = tokens.shape
    Vp, Ep = emb_p.shape
    H2p = w1_p.shape[1]
    Hp = w2_p.shape[1]
    Cp = w3_p.shape[1]

    TB = _pick_batch_tile(B)
    Bp = _round_up(B, TB)

    tok_p = jnp.pad(tokens.astype(jnp.int32), ((0, Bp - B), (0, 0)))

    def _resident(shape):
        # Same block every grid step -> stays VMEM-resident (no re-DMA).
        return pl.BlockSpec(shape, lambda i: (0, 0))

    in_specs = [pl.BlockSpec((TB, S), lambda i: (i, 0))]          # tokens
    args = [tok_p]
    if mask is not None:
        # Padded (fake) batch rows get mask=1 so their denominator is non-zero;
        # those rows are sliced off below.
        mask_p = jnp.pad(mask.astype(jnp.float32), ((0, Bp - B), (0, 0)),
                         constant_values=1.0)
        in_specs.append(pl.BlockSpec((TB, S), lambda i: (i, 0)))  # mask
        args.append(mask_p)
    in_specs += [
        _resident((Vp, Ep)),                           # embedding table (bf16)
        _resident((Ep, H2p)), _resident((1, H2p)),     # w1, b1
        _resident((H2p, Hp)), _resident((1, Hp)),      # w2, b2
        _resident((Hp, Cp)), _resident((1, Cp)),       # w3, b3
    ]
    args += [emb_p, w1_p, b1_p, w2_p, b2_p, w3_p, b3_p]

    out = pl.pallas_call(
        _make_kernel(mask is not None),
        out_shape=jax.ShapeDtypeStruct((Bp, Cp), jnp.float32),
        grid=(Bp // TB,),
        in_specs=in_specs,
        out_specs=pl.BlockSpec((TB, Cp), lambda i: (i, 0)),
        compiler_params=pltpu.CompilerParams(
            dimension_semantics=("parallel",)),   # shard batch tiles over TCs
    )(*args)
    return out[:B, :C]


def init_params(key, vocab_size, emb_size, hidden_size, num_classes):
    ks = jax.random.split(key, 7)
    emb_w = jax.random.normal(ks[0], (vocab_size, emb_size), jnp.float32) * 0.1
    # PyTorch Linear stores (out, in); we keep (in, out) so the math is x @ W + b.
    w1 = jax.random.normal(ks[1], (emb_size, 2 * hidden_size), jnp.float32) * 0.05
    b1 = jax.random.normal(ks[2], (2 * hidden_size,), jnp.float32) * 0.01
    w2 = jax.random.normal(ks[3], (2 * hidden_size, hidden_size), jnp.float32) * 0.05
    b2 = jax.random.normal(ks[4], (hidden_size,), jnp.float32) * 0.01
    w3 = jax.random.normal(ks[5], (hidden_size, num_classes), jnp.float32) * 0.05
    b3 = jax.random.normal(ks[6], (num_classes,), jnp.float32) * 0.01
    return (emb_w, w1, b1, w2, b2, w3, b3)


if __name__ == "__main__":
    vocab_size, emb_size, hidden_size, num_classes = 50, 32, 32, 4
    B, S = 2, 8

    key = jax.random.PRNGKey(0)
    kp, kt, km = jax.random.split(key, 3)

    params = init_params(kp, vocab_size, emb_size, hidden_size, num_classes)
    prepared = prepare_params(params)     # one-time pad / bf16 cast (cached)

    tokens = jax.random.randint(kt, (B, S), 0, vocab_size, dtype=jnp.int32)
    mask = (jax.random.uniform(km, (B, S)) > 0.3).astype(jnp.float32)
    mask = mask.at[:, 0].set(1.0)   # avoid all-zero mask rows (inf/nan, same as PyTorch)

    out_mean = net_forward(tokens, prepared, mask=None)   # mean over the sequence
    out_mask = net_forward(tokens, prepared, mask=mask)   # masked mean
    jax.block_until_ready((out_mean, out_mask))

    # Pure-JAX f32 reference (kernel runs the matmuls in bf16 -> looser tol).
    emb_w, w1, b1, w2, b2, w3, b3 = params

    def mlp(p):
        h = jnp.maximum(p @ w1 + b1, 0.0)
        h = jnp.maximum(h @ w2 + b2, 0.0)
        return h @ w3 + b3

    xe = jnp.take(emb_w, tokens, axis=0)
    ref_mean = mlp(jnp.mean(xe, axis=1))
    ref_mask = mlp(jnp.sum(xe * mask[..., None], axis=1)
                   / jnp.sum(mask, axis=1, keepdims=True))

    assert out_mean.shape == (B, num_classes)
    assert out_mask.shape == (B, num_classes)
    assert jnp.allclose(out_mean, ref_mean, atol=2e-2, rtol=2e-2)
    assert jnp.allclose(out_mask, ref_mask, atol=2e-2, rtol=2e-2)

    # Also exercise a multi-step batch grid (TB=128, 2 grid steps) with padding.
    B2 = 200
    kt2, km2 = jax.random.split(jax.random.PRNGKey(1))
    tokens2 = jax.random.randint(kt2, (B2, S), 0, vocab_size, dtype=jnp.int32)
    mask2 = (jax.random.uniform(km2, (B2, S)) > 0.3).astype(jnp.float32)
    mask2 = mask2.at[:, 0].set(1.0)
    out2 = net_forward(tokens2, prepared, mask=mask2)
    jax.block_until_ready(out2)
    xe2 = jnp.take(emb_w, tokens2, axis=0)
    ref2 = mlp(jnp.sum(xe2 * mask2[..., None], axis=1)
               / jnp.sum(mask2, axis=1, keepdims=True))
    assert out2.shape == (B2, num_classes)
    assert jnp.allclose(out2, ref2, atol=2e-2, rtol=2e-2)

    print("KERNEL_OK")
</pallas_src>

<mosaic_0001>
module attributes {stable_mosaic.version = 11 : i64} {
  func.func @kernel(%arg0: i32, %arg1: memref<8x8xi32, #tpu.memory_space<vmem>>, %arg2: memref<128x128xbf16, #tpu.memory_space<vmem>>, %arg3: memref<128x128xbf16, #tpu.memory_space<vmem>>, %arg4: memref<1x128xf32, #tpu.memory_space<vmem>>, %arg5: memref<128x128xbf16, #tpu.memory_space<vmem>>, %arg6: memref<1x128xf32, #tpu.memory_space<vmem>>, %arg7: memref<128x128xbf16, #tpu.memory_space<vmem>>, %arg8: memref<1x128xf32, #tpu.memory_space<vmem>>, %arg9: memref<8x128xf32, #tpu.memory_space<vmem>>) attributes {dimension_semantics = [#tpu.dimension_semantics<parallel>], iteration_bounds = array<i64: 1>, scalar_prefetch = 0 : i64, scratch_operands = 0 : i64, tpu.core_type = #tpu.core_type<tc>, window_params = [{transform_indices = @transform_0, window_bounds = array<i64: 8, 8>}, {pipeline_mode = #tpu.pipeline_mode<synchronous>, transform_indices = @transform_1, window_bounds = array<i64: 128, 128>}, {pipeline_mode = #tpu.pipeline_mode<synchronous>, transform_indices = @transform_2, window_bounds = array<i64: 128, 128>}, {pipeline_mode = #tpu.pipeline_mode<synchronous>, transform_indices = @transform_3, window_bounds = array<i64: 1, 128>}, {pipeline_mode = #tpu.pipeline_mode<synchronous>, transform_indices = @transform_4, window_bounds = array<i64: 128, 128>}, {pipeline_mode = #tpu.pipeline_mode<synchronous>, transform_indices = @transform_5, window_bounds = array<i64: 1, 128>}, {pipeline_mode = #tpu.pipeline_mode<synchronous>, transform_indices = @transform_6, window_bounds = array<i64: 128, 128>}, {pipeline_mode = #tpu.pipeline_mode<synchronous>, transform_indices = @transform_7, window_bounds = array<i64: 1, 128>}, {transform_indices = @transform_8, window_bounds = array<i64: 8, 128>}]} {
    %c0 = arith.constant 0 : index
    %c0_0 = arith.constant 0 : index
    %0 = vector.load %arg1[%c0, %c0_0] : memref<8x8xi32, #tpu.memory_space<vmem>>, vector<8x8xi32>
    %1 = tpu.iota {dimensions = array<i32: 1>} : vector<8x128xi32>
    %cst = arith.constant 0.000000e+00 : f32
    %2 = vector.broadcast %cst : f32 to vector<8x128xf32>
    %3 = vector.extract_strided_slice %0 {offsets = [0, 0], sizes = [8, 1], strides = [1, 1]} : vector<8x8xi32> to vector<8x1xi32>
    %4 = vector.broadcast %3 : vector<8x1xi32> to vector<8x128xi32>
    %5 = arith.cmpi eq, %4, %1 : vector<8x128xi32>
    %cst_1 = arith.constant 1.000000e+00 : f32
    %cst_2 = arith.constant 0.000000e+00 : f32
    %6 = vector.broadcast %cst_1 : f32 to vector<8x128xf32>
    %7 = vector.broadcast %cst_2 : f32 to vector<8x128xf32>
    %8 = arith.select %5, %6, %7 : vector<8x128xi1>, vector<8x128xf32>
    %9 = arith.addf %2, %8 : vector<8x128xf32>
    %10 = vector.extract_strided_slice %0 {offsets = [0, 1], sizes = [8, 1], strides = [1, 1]} : vector<8x8xi32> to vector<8x1xi32>
    %11 = vector.broadcast %10 : vector<8x1xi32> to vector<8x128xi32>
    %12 = arith.cmpi eq, %11, %1 : vector<8x128xi32>
    %cst_3 = arith.constant 1.000000e+00 : f32
    %cst_4 = arith.constant 0.000000e+00 : f32
    %13 = vector.broadcast %cst_3 : f32 to vector<8x128xf32>
    %14 = vector.broadcast %cst_4 : f32 to vector<8x128xf32>
    %15 = arith.select %12, %13, %14 : vector<8x128xi1>, vector<8x128xf32>
    %16 = arith.addf %9, %15 : vector<8x128xf32>
    %17 = vector.extract_strided_slice %0 {offsets = [0, 2], sizes = [8, 1], strides = [1, 1]} : vector<8x8xi32> to vector<8x1xi32>
    %18 = vector.broadcast %17 : vector<8x1xi32> to vector<8x128xi32>
    %19 = arith.cmpi eq, %18, %1 : vector<8x128xi32>
    %cst_5 = arith.constant 1.000000e+00 : f32
    %cst_6 = arith.constant 0.000000e+00 : f32
    %20 = vector.broadcast %cst_5 : f32 to vector<8x128xf32>
    %21 = vector.broadcast %cst_6 : f32 to vector<8x128xf32>
    %22 = arith.select %19, %20, %21 : vector<8x128xi1>, vector<8x128xf32>
    %23 = arith.addf %16, %22 : vector<8x128xf32>
    %24 = vector.extract_strided_slice %0 {offsets = [0, 3], sizes = [8, 1], strides = [1, 1]} : vector<8x8xi32> to vector<8x1xi32>
    %25 = vector.broadcast %24 : vector<8x1xi32> to vector<8x128xi32>
    %26 = arith.cmpi eq, %25, %1 : vector<8x128xi32>
    %cst_7 = arith.constant 1.000000e+00 : f32
    %cst_8 = arith.constant 0.000000e+00 : f32
    %27 = vector.broadcast %cst_7 : f32 to vector<8x128xf32>
    %28 = vector.broadcast %cst_8 : f32 to vector<8x128xf32>
    %29 = arith.select %26, %27, %28 : vector<8x128xi1>, vector<8x128xf32>
    %30 = arith.addf %23, %29 : vector<8x128xf32>
    %31 = vector.extract_strided_slice %0 {offsets = [0, 4], sizes = [8, 1], strides = [1, 1]} : vector<8x8xi32> to vector<8x1xi32>
    %32 = vector.broadcast %31 : vector<8x1xi32> to vector<8x128xi32>
    %33 = arith.cmpi eq, %32, %1 : vector<8x128xi32>
    %cst_9 = arith.constant 1.000000e+00 : f32
    %cst_10 = arith.constant 0.000000e+00 : f32
    %34 = vector.broadcast %cst_9 : f32 to vector<8x128xf32>
    %35 = vector.broadcast %cst_10 : f32 to vector<8x128xf32>
    %36 = arith.select %33, %34, %35 : vector<8x128xi1>, vector<8x128xf32>
    %37 = arith.addf %30, %36 : vector<8x128xf32>
    %38 = vector.extract_strided_slice %0 {offsets = [0, 5], sizes = [8, 1], strides = [1, 1]} : vector<8x8xi32> to vector<8x1xi32>
    %39 = vector.broadcast %38 : vector<8x1xi32> to vector<8x128xi32>
    %40 = arith.cmpi eq, %39, %1 : vector<8x128xi32>
    %cst_11 = arith.constant 1.000000e+00 : f32
    %cst_12 = arith.constant 0.000000e+00 : f32
    %41 = vector.broadcast %cst_11 : f32 to vector<8x128xf32>
    %42 = vector.broadcast %cst_12 : f32 to vector<8x128xf32>
    %43 = arith.select %40, %41, %42 : vector<8x128xi1>, vector<8x128xf32>
    %44 = arith.addf %37, %43 : vector<8x128xf32>
    %45 = vector.extract_strided_slice %0 {offsets = [0, 6], sizes = [8, 1], strides = [1, 1]} : vector<8x8xi32> to vector<8x1xi32>
    %46 = vector.broadcast %45 : vector<8x1xi32> to vector<8x128xi32>
    %47 = arith.cmpi eq, %46, %1 : vector<8x128xi32>
    %cst_13 = arith.constant 1.000000e+00 : f32
    %cst_14 = arith.constant 0.000000e+00 : f32
    %48 = vector.broadcast %cst_13 : f32 to vector<8x128xf32>
    %49 = vector.broadcast %cst_14 : f32 to vector<8x128xf32>
    %50 = arith.select %47, %48, %49 : vector<8x128xi1>, vector<8x128xf32>
    %51 = arith.addf %44, %50 : vector<8x128xf32>
    %52 = vector.extract_strided_slice %0 {offsets = [0, 7], sizes = [8, 1], strides = [1, 1]} : vector<8x8xi32> to vector<8x1xi32>
    %53 = vector.broadcast %52 : vector<8x1xi32> to vector<8x128xi32>
    %54 = arith.cmpi eq, %53, %1 : vector<8x128xi32>
    %cst_15 = arith.constant 1.000000e+00 : f32
    %cst_16 = arith.constant 0.000000e+00 : f32
    %55 = vector.broadcast %cst_15 : f32 to vector<8x128xf32>
    %56 = vector.broadcast %cst_16 : f32 to vector<8x128xf32>
    %57 = arith.select %54, %55, %56 : vector<8x128xi1>, vector<8x128xf32>
    %58 = arith.addf %51, %57 : vector<8x128xf32>
    %59 = arith.truncf %58 : vector<8x128xf32> to vector<8x128xbf16>
    %c0_17 = arith.constant 0 : index
    %c0_18 = arith.constant 0 : index
    %60 = vector.load %arg2[%c0_17, %c0_18] : memref<128x128xbf16, #tpu.memory_space<vmem>>, vector<128x128xbf16>
    %cst_19 = arith.constant dense<0.000000e+00> : vector<8x128xf32>
    %61 = tpu.matmul %59, %60, %cst_19 {dimension_numbers = #tpu.dot_dimension_numbers<[1], [0], [0], [1], [0, 0, 1, 1], [], []>} : vector<8x128xbf16>, vector<128x128xbf16>, vector<8x128xf32> -> vector<8x128xf32>
    %cst_20 = arith.constant 1.250000e-01 : f32
    %62 = vector.broadcast %cst_20 : f32 to vector<8x128xf32>
    %63 = arith.mulf %61, %62 : vector<8x128xf32>
    %64 = arith.truncf %63 : vector<8x128xf32> to vector<8x128xbf16>
    %c0_21 = arith.constant 0 : index
    %c0_22 = arith.constant 0 : index
    %65 = vector.load %arg3[%c0_21, %c0_22] : memref<128x128xbf16, #tpu.memory_space<vmem>>, vector<128x128xbf16>
    %cst_23 = arith.constant dense<0.000000e+00> : vector<8x128xf32>
    %66 = tpu.matmul %64, %65, %cst_23 {dimension_numbers = #tpu.dot_dimension_numbers<[1], [0], [0], [1], [0, 0, 1, 1], [], []>} : vector<8x128xbf16>, vector<128x128xbf16>, vector<8x128xf32> -> vector<8x128xf32>
    %c0_24 = arith.constant 0 : index
    %c0_25 = arith.constant 0 : index
    %67 = vector.load %arg4[%c0_24, %c0_25] : memref<1x128xf32, #tpu.memory_space<vmem>>, vector<1x128xf32>
    %68 = vector.broadcast %67 : vector<1x128xf32> to vector<8x128xf32>
    %69 = arith.addf %66, %68 : vector<8x128xf32>
    %cst_26 = arith.constant 0.000000e+00 : f32
    %70 = vector.broadcast %cst_26 : f32 to vector<8x128xf32>
    %71 = arith.maximumf %69, %70 : vector<8x128xf32>
    %72 = arith.truncf %71 : vector<8x128xf32> to vector<8x128xbf16>
    %c0_27 = arith.constant 0 : index
    %c0_28 = arith.constant 0 : index
    %73 = vector.load %arg5[%c0_27, %c0_28] : memref<128x128xbf16, #tpu.memory_space<vmem>>, vector<128x128xbf16>
    %cst_29 = arith.constant dense<0.000000e+00> : vector<8x128xf32>
    %74 = tpu.matmul %72, %73, %cst_29 {dimension_numbers = #tpu.dot_dimension_numbers<[1], [0], [0], [1], [0, 0, 1, 1], [], []>} : vector<8x128xbf16>, vector<128x128xbf16>, vector<8x128xf32> -> vector<8x128xf32>
    %c0_30 = arith.constant 0 : index
    %c0_31 = arith.constant 0 : index
    %75 = vector.load %arg6[%c0_30, %c0_31] : memref<1x128xf32, #tpu.memory_space<vmem>>, vector<1x128xf32>
    %76 = vector.broadcast %75 : vector<1x128xf32> to vector<8x128xf32>
    %77 = arith.addf %74, %76 : vector<8x128xf32>
    %cst_32 = arith.constant 0.000000e+00 : f32
    %78 = vector.broadcast %cst_32 : f32 to vector<8x128xf32>
    %79 = arith.maximumf %77, %78 : vector<8x128xf32>
    %80 = arith.truncf %79 : vector<8x128xf32> to vector<8x128xbf16>
    %c0_33 = arith.constant 0 : index
    %c0_34 = arith.constant 0 : index
    %81 = vector.load %arg7[%c0_33, %c0_34] : memref<128x128xbf16, #tpu.memory_space<vmem>>, vector<128x128xbf16>
    %cst_35 = arith.constant dense<0.000000e+00> : vector<8x128xf32>
    %82 = tpu.matmul %80, %81, %cst_35 {dimension_numbers = #tpu.dot_dimension_numbers<[1], [0], [0], [1], [0, 0, 1, 1], [], []>} : vector<8x128xbf16>, vector<128x128xbf16>, vector<8x128xf32> -> vector<8x128xf32>
    %c0_36 = arith.constant 0 : index
    %c0_37 = arith.constant 0 : index
    %83 = vector.load %arg8[%c0_36, %c0_37] : memref<1x128xf32, #tpu.memory_space<vmem>>, vector<1x128xf32>
    %84 = vector.broadcast %83 : vector<1x128xf32> to vector<8x128xf32>
    %85 = arith.addf %82, %84 : vector<8x128xf32>
    %c0_38 = arith.constant 0 : index
    %c0_39 = arith.constant 0 : index
    %86 = vector.load %arg9[%c0_38, %c0_39] : memref<8x128xf32, #tpu.memory_space<vmem>>, vector<8x128xf32>
    tpu.vector_store %arg9[%c0_38, %c0_39], %85 {strides = array<i32>} : memref<8x128xf32, #tpu.memory_space<vmem>>, vector<8x128xf32>,
    return
  }
  func.func @transform_0(%arg0: i32) -> (i32, i32) {
    %c0_i32 = arith.constant 0 : i32
    %c0_i32_0 = arith.constant 0 : i32
    return %arg0, %c0_i32 : i32, i32
  }
  func.func @transform_1(%arg0: i32) -> (i32, i32) {
    %c0_i32 = arith.constant 0 : i32
    %c0_i32_0 = arith.constant 0 : i32
    %c0_i32_1 = arith.constant 0 : i32
    return %c0_i32, %c0_i32_0 : i32, i32
  }
  func.func @transform_2(%arg0: i32) -> (i32, i32) {
    %c0_i32 = arith.constant 0 : i32
    %c0_i32_0 = arith.constant 0 : i32
    %c0_i32_1 = arith.constant 0 : i32
    return %c0_i32, %c0_i32_0 : i32, i32
  }
  func.func @transform_3(%arg0: i32) -> (i32, i32) {
    %c0_i32 = arith.constant 0 : i32
    %c0_i32_0 = arith.constant 0 : i32
    %c0_i32_1 = arith.constant 0 : i32
    return %c0_i32, %c0_i32_0 : i32, i32
  }
  func.func @transform_4(%arg0: i32) -> (i32, i32) {
    %c0_i32 = arith.constant 0 : i32
    %c0_i32_0 = arith.constant 0 : i32
    %c0_i32_1 = arith.constant 0 : i32
    return %c0_i32, %c0_i32_0 : i32, i32
  }
  func.func @transform_5(%arg0: i32) -> (i32, i32) {
    %c0_i32 = arith.constant 0 : i32
    %c0_i32_0 = arith.constant 0 : i32
    %c0_i32_1 = arith.constant 0 : i32
    return %c0_i32, %c0_i32_0 : i32, i32
  }
  func.func @transform_6(%arg0: i32) -> (i32, i32) {
    %c0_i32 = arith.constant 0 : i32
    %c0_i32_0 = arith.constant 0 : i32
    %c0_i32_1 = arith.constant 0 : i32
    return %c0_i32, %c0_i32_0 : i32, i32
  }
  func.func @transform_7(%arg0: i32) -> (i32, i32) {
    %c0_i32 = arith.constant 0 : i32
    %c0_i32_0 = arith.constant 0 : i32
    %c0_i32_1 = arith.constant 0 : i32
    return %c0_i32, %c0_i32_0 : i32, i32
  }
  func.func @transform_8(%arg0: i32) -> (i32, i32) {
    %c0_i32 = arith.constant 0 : i32
    %c0_i32_0 = arith.constant 0 : i32
    return %arg0, %c0_i32 : i32, i32
  }
}

</mosaic_0001>

<llo_original>
// kernel: tpu_custom_call.1
$region0: #{tpu_custom_call.1}
  #allocation0 [shape = 'u32[]', space=smem, size = 0x4, offset = 0x4, fixed_abs, tag = 'smem constant byte address 0x4 - core index']
  #allocation1 [shape = 'u32[144,128]{1,0:T(1,128)}', space=vmem, size = 0x12000, scoped, tag = 'internal scratch']
  %s0 = inlined_call_operand.hbm [shape: s32[8,8], index: 0, kind: input, shape index: {}]
  %s1 = inlined_call_operand.hbm [shape: bf16[128,128], index: 1, kind: input, shape index: {}]
  %s2 = inlined_call_operand.hbm [shape: bf16[128,128], index: 2, kind: input, shape index: {}]
  %s3 = inlined_call_operand.vmem [shape: f32[1,128], index: 3, kind: input, shape index: {}]
  %s4 = inlined_call_operand.hbm [shape: bf16[128,128], index: 4, kind: input, shape index: {}]
  %s5 = inlined_call_operand.vmem [shape: f32[1,128], index: 5, kind: input, shape index: {}]
  %s6 = inlined_call_operand.hbm [shape: bf16[128,128], index: 6, kind: input, shape index: {}]
  %s7 = inlined_call_operand.vmem [shape: f32[1,128], index: 7, kind: input, shape index: {}]
  %s8 = inlined_call_operand.hbm [shape: f32[8,128], index: 8, kind: output, shape index: {}]
  %s9 = sld [smem:[#allocation0]]
  $region62: #{tpu_custom_call.1} parent=0
    _
  %s11 = ssub.s32 1, %s9
  %s12 = scalar_select 0, %s11, %s9
  $region1: #{tpu_custom_call.1} parent=0
    #allocation2 [shape = 'u8[4096]{0}', space=vmem, size = 0x1000, scoped, tag = 'input window, operand 0, single buffered']
    #allocation3 [shape = 's32[1]{0}', space=sflag, size = 0x4, scoped, tag = 'scoped memory for tpu_custom_call.1']
    #allocation4 [shape = 's32[1]{0}', space=sflag, size = 0x4, scoped, tag = 'scoped memory for tpu_custom_call.1']
    #allocation5 [shape = 'u8[32768]{0}', space=vmem, size = 0x8000, scoped, tag = 'input window, operand 1, single buffered']
    #allocation6 [shape = 's32[1]{0}', space=sflag, size = 0x4, scoped, tag = 'scoped memory for tpu_custom_call.1']
    #allocation7 [shape = 'u8[32768]{0}', space=vmem, size = 0x8000, scoped, tag = 'input window, operand 2, single buffered']
    #allocation8 [shape = 'u8[32768]{0}', space=vmem, size = 0x8000, scoped, tag = 'input window, operand 4, single buffered']
    #allocation9 [shape = 's32[1]{0}', space=sflag, size = 0x4, scoped, tag = 'scoped memory for tpu_custom_call.1']
    #allocation10 [shape = 'u8[32768]{0}', space=vmem, size = 0x8000, scoped, tag = 'input window, operand 6, single buffered']
    #allocation11 [shape = 'u8[4096]{0}', space=vmem, size = 0x1000, scoped, tag = 'output window, operand 0, single buffered']
    %13 = vsyncpa [#allocation3], 0
    %14 = vsyncpa [#allocation6], 0
    %15 = vsyncpa [#allocation9], 0
    %16 = vsyncpa [#allocation4], 0
    // Predicated region
    $region2: #{tpu_custom_call.1} parent=1 // pred_check
      _
    $region3: #{tpu_custom_call.1} parent=1 // pred_check_branch
      %18 = sbr.rel (0) target = $region5
    $region4: #{tpu_custom_call.1} parent=1 // pred_region
      %s20 = ssub.s32 128, 128
      %21 = vsyncadd [#allocation3], %s20
      %s23 = sshll.u32 [#allocation2], 4
      %s24 = int_to_ptr.vmem [resolvable:$true] %s23
      %26 = dma.hbm_to_vmem [thread:$0]  %s0, 128, %s24, [#allocation3]
    $region5: #{tpu_custom_call.1} parent=1 // pred_fallthru
      _
    // Predicated region
    $region6: #{tpu_custom_call.1} parent=1 // pred_check
      _
    $region7: #{tpu_custom_call.1} parent=1 // pred_check_branch
      %28 = sbr.rel (0) target = $region9
    $region8: #{tpu_custom_call.1} parent=1 // pred_region
      %s30 = ssub.s32 1024, 1024
      %31 = vsyncadd [#allocation6], %s30
      %s32 = sshll.u32 [#allocation5], 4
      %s33 = int_to_ptr.vmem [resolvable:$true] %s32
      %38 = dma.hbm_to_vmem [thread:$0]  %s1, 1024, %s33, [#allocation6], 64, 64, 4
    $region9: #{tpu_custom_call.1} parent=1 // pred_fallthru
      _
    // Predicated region
    $region10: #{tpu_custom_call.1} parent=1 // pred_check
      _
    $region11: #{tpu_custom_call.1} parent=1 // pred_check_branch
      %40 = sbr.rel (0) target = $region13
    $region12: #{tpu_custom_call.1} parent=1 // pred_region
      %s42 = ssub.s32 1024, 1024
      %43 = vsyncadd [#allocation6], %s42
      %s44 = sshll.u32 [#allocation7], 4
      %s45 = int_to_ptr.vmem [resolvable:$true] %s44
      %50 = dma.hbm_to_vmem [thread:$0]  %s2, 1024, %s45, [#allocation6], 64, 64, 4
    $region13: #{tpu_custom_call.1} parent=1 // pred_fallthru
      _
    // Predicated region
    $region14: #{tpu_custom_call.1} parent=1 // pred_check
      _
    $region15: #{tpu_custom_call.1} parent=1 // pred_check_branch
      %52 = sbr.rel (0) target = $region17
    $region16: #{tpu_custom_call.1} parent=1 // pred_region
      _
    $region17: #{tpu_custom_call.1} parent=1 // pred_fallthru
      _
    // Predicated region
    $region18: #{tpu_custom_call.1} parent=1 // pred_check
      _
    $region19: #{tpu_custom_call.1} parent=1 // pred_check_branch
      %54 = sbr.rel (0) target = $region21
    $region20: #{tpu_custom_call.1} parent=1 // pred_region
      %s56 = ssub.s32 1024, 1024
      %57 = vsyncadd [#allocation9], %s56
      %s58 = sshll.u32 [#allocation8], 4
      %s59 = int_to_ptr.vmem [resolvable:$true] %s58
      %64 = dma.hbm_to_vmem [thread:$0]  %s4, 1024, %s59, [#allocation9], 64, 64, 4
    $region21: #{tpu_custom_call.1} parent=1 // pred_fallthru
      _
    // Predicated region
    $region22: #{tpu_custom_call.1} parent=1 // pred_check
      _
    $region23: #{tpu_custom_call.1} parent=1 // pred_check_branch
      %66 = sbr.rel (0) target = $region25
    $region24: #{tpu_custom_call.1} parent=1 // pred_region
      _
    $region25: #{tpu_custom_call.1} parent=1 // pred_fallthru
      _
    // Predicated region
    $region26: #{tpu_custom_call.1} parent=1 // pred_check
      _
    $region27: #{tpu_custom_call.1} parent=1 // pred_check_branch
      %68 = sbr.rel (0) target = $region29
    $region28: #{tpu_custom_call.1} parent=1 // pred_region
      %s70 = ssub.s32 1024, 1024
      %71 = vsyncadd [#allocation9], %s70
      %s72 = sshll.u32 [#allocation10], 4
      %s73 = int_to_ptr.vmem [resolvable:$true] %s72
      %78 = dma.hbm_to_vmem [thread:$0]  %s6, 1024, %s73, [#allocation9], 64, 64, 4
    $region29: #{tpu_custom_call.1} parent=1 // pred_fallthru
      _
    // Predicated region
    $region30: #{tpu_custom_call.1} parent=1 // pred_check
      _
    $region31: #{tpu_custom_call.1} parent=1 // pred_check_branch
      %80 = sbr.rel (0) target = $region33
    $region32: #{tpu_custom_call.1} parent=1 // pred_region
      _
    $region33: #{tpu_custom_call.1} parent=1 // pred_fallthru
      _
    // Predicated region
    $region34: #{tpu_custom_call.1} parent=1 // pred_check
      _
    $region35: #{tpu_custom_call.1} parent=1 // pred_check_branch
      %82 = sbr.rel (0) target = $region37
    $region36: #{tpu_custom_call.1} parent=1 // pred_region
      %83 = dma.done [#allocation3], 128
    $region37: #{tpu_custom_call.1} parent=1 // pred_fallthru
      _
    // Predicated region
    $region38: #{tpu_custom_call.1} parent=1 // pred_check
      _
    $region39: #{tpu_custom_call.1} parent=1 // pred_check_branch
      %85 = sbr.rel (0) target = $region41
    $region40: #{tpu_custom_call.1} parent=1 // pred_region
      %86 = dma.done [#allocation6], 1024
    $region41: #{tpu_custom_call.1} parent=1 // pred_fallthru
      _
    // Predicated region
    $region42: #{tpu_custom_call.1} parent=1 // pred_check
      _
    $region43: #{tpu_custom_call.1} parent=1 // pred_check_branch
      %88 = sbr.rel (0) target = $region45
    $region44: #{tpu_custom_call.1} parent=1 // pred_region
      %89 = dma.done [#allocation6], 1024
    $region45: #{tpu_custom_call.1} parent=1 // pred_fallthru
      _
    // Predicated region
    $region46: #{tpu_custom_call.1} parent=1 // pred_check
      _
    $region47: #{tpu_custom_call.1} parent=1 // pred_check_branch
      %91 = sbr.rel (0) target = $region49
    $region48: #{tpu_custom_call.1} parent=1 // pred_region
      %92 = dma.done [#allocation9], 1024
    $region49: #{tpu_custom_call.1} parent=1 // pred_fallthru
      _
    // Predicated region
    $region50: #{tpu_custom_call.1} parent=1 // pred_check
      _
    $region51: #{tpu_custom_call.1} parent=1 // pred_check_branch
      %94 = sbr.rel (0) target = $region53
    $region52: #{tpu_custom_call.1} parent=1 // pred_region
      %95 = dma.done [#allocation9], 1024
    $region53: #{tpu_custom_call.1} parent=1 // pred_fallthru
      _
    %v97 = vld [vmem:[#allocation2] sm:$0xff]
    %v98 = vlaneseq
    %v99 = vand.u32 %v98, 127
    %100 = vset.pattern.permute.xlu0 0
    %101 = vperm.xlu0 %100, %v97
    %v102 = vpop.permute.xlu0 %101
    %vm103 = vcmp.eq.s32.totalorder %v102, %v99
    %v104 = vsel %vm103, 1.0, 0.0
    %v105 = vadd.f32 %v104, 0.0
    %106 = vset.pattern.permute.xlu0 1
    %107 = vperm.xlu0 %106, %v97
    %v108 = vpop.permute.xlu0 %107
    %vm109 = vcmp.eq.s32.totalorder %v108, %v99
    %v110 = vsel %vm109, 1.0, 0.0
    %v111 = vadd.f32 %v105, %v110
    %112 = vset.pattern.permute.xlu0 2
    %113 = vperm.xlu0 %112, %v97
    %v114 = vpop.permute.xlu0 %113
    %vm115 = vcmp.eq.s32.totalorder %v114, %v99
    %v116 = vsel %vm115, 1.0, 0.0
    %v117 = vadd.f32 %v111, %v116
    %118 = vset.pattern.permute.xlu0 3
    %119 = vperm.xlu0 %118, %v97
    %v120 = vpop.permute.xlu0 %119
    %vm121 = vcmp.eq.s32.totalorder %v120, %v99
    %v122 = vsel %vm121, 1.0, 0.0
    %v123 = vadd.f32 %v117, %v122
    %124 = vset.pattern.permute.xlu0 4
    %125 = vperm.xlu0 %124, %v97
    %v126 = vpop.permute.xlu0 %125
    %vm127 = vcmp.eq.s32.totalorder %v126, %v99
    %v128 = vsel %vm127, 1.0, 0.0
    %v129 = vadd.f32 %v123, %v128
    %130 = vset.pattern.permute.xlu0 5
    %131 = vperm.xlu0 %130, %v97
    %v132 = vpop.permute.xlu0 %131
    %vm133 = vcmp.eq.s32.totalorder %v132, %v99
    %v134 = vsel %vm133, 1.0, 0.0
    %v135 = vadd.f32 %v129, %v134
    %136 = vset.pattern.permute.xlu0 6
    %137 = vperm.xlu0 %136, %v97
    %v138 = vpop.permute.xlu0 %137
    %vm139 = vcmp.eq.s32.totalorder %v138, %v99
    %v140 = vsel %vm139, 1.0, 0.0
    %v141 = vadd.f32 %v135, %v140
    %142 = vset.pattern.permute.xlu0 7
    %143 = vperm.xlu0 %142, %v97
    %v144 = vpop.permute.xlu0 %143
    %vm145 = vcmp.eq.s32.totalorder %v144, %v99
    %v146 = vsel %vm145, 1.0, 0.0
    %v147 = vadd.f32 %v141, %v146
    %v148 = vpack.c.bf16 %v147, %v147
    %v149 = vld [vmem:[#allocation5] sm:$0xf]
    %v150 = vld [vmem:[#allocation5 + $0x4] sm:$0xf]
    %v151 = vld [vmem:[#allocation5 + $0x8] sm:$0xf]
    %v152 = vld [vmem:[#allocation5 + $0xc] sm:$0xf]
    %v153 = vld [vmem:[#allocation5 + $0x10] sm:$0xf]
    %v154 = vld [vmem:[#allocation5 + $0x14] sm:$0xf]
    %v155 = vld [vmem:[#allocation5 + $0x18] sm:$0xf]
    %v156 = vld [vmem:[#allocation5 + $0x1c] sm:$0xf]
    %v157 = vld [vmem:[#allocation5 + $0x20] sm:$0xf]
    %v158 = vld [vmem:[#allocation5 + $0x24] sm:$0xf]
    %v159 = vld [vmem:[#allocation5 + $0x28] sm:$0xf]
    %v160 = vld [vmem:[#allocation5 + $0x2c] sm:$0xf]
    %v161 = vld [vmem:[#allocation5 + $0x30] sm:$0xf]
    %v162 = vld [vmem:[#allocation5 + $0x34] sm:$0xf]
    %v163 = vld [vmem:[#allocation5 + $0x38] sm:$0xf]
    %v164 = vld [vmem:[#allocation5 + $0x3c] sm:$0xf]
    %v181 = vunpack.c.l.b16 %v149
    %v182 = vunpack.c.l.b16 %v150
    %v183 = vunpack.c.l.b16 %v151
    %v184 = vunpack.c.l.b16 %v152
    %v185 = vunpack.c.l.b16 %v153
    %v186 = vunpack.c.l.b16 %v154
    %v187 = vunpack.c.l.b16 %v155
    %v188 = vunpack.c.l.b16 %v156
    %v189 = vunpack.c.l.b16 %v157
    %v190 = vunpack.c.l.b16 %v158
    %v191 = vunpack.c.l.b16 %v159
    %v192 = vunpack.c.l.b16 %v160
    %v193 = vunpack.c.l.b16 %v161
    %v194 = vunpack.c.l.b16 %v162
    %v195 = vunpack.c.l.b16 %v163
    %v196 = vunpack.c.l.b16 %v164
    %v197 = vpack.c.b16 %v182, %v181
    %v198 = vpack.c.b16 %v184, %v183
    %v199 = vpack.c.b16 %v186, %v185
    %v200 = vpack.c.b16 %v188, %v187
    %v201 = vpack.c.b16 %v190, %v189
    %v202 = vpack.c.b16 %v192, %v191
    %v203 = vpack.c.b16 %v194, %v193
    %v204 = vpack.c.b16 %v196, %v195
    %213 = vmatprep.subr.bf16.mxu0 0
    %214 = vmatpush1.bf16.msra.mxu0 %v204
    %215 = vmatprep.subr.bf16.mxu0 0
    %216 = vmatpush1.bf16.msra.mxu0 %v203
    %217 = vmatprep.subr.bf16.mxu0 0
    %218 = vmatpush1.bf16.msra.mxu0 %v202
    %219 = vmatprep.subr.bf16.mxu0 0
    %220 = vmatpush1.bf16.msra.mxu0 %v201
    %221 = vmatprep.subr.bf16.mxu0 0
    %222 = vmatpush1.bf16.msra.mxu0 %v200
    %223 = vmatprep.subr.bf16.mxu0 0
    %224 = vmatpush1.bf16.msra.mxu0 %v199
    %225 = vmatprep.subr.bf16.mxu0 0
    %226 = vmatpush1.bf16.msra.mxu0 %v198
    %227 = vmatprep.subr.bf16.mxu0 0
    %228 = vmatpush1.bf16.msra.mxu0 %v197
    %229 = vmatprep.subr.bf16.mxu0 0
    %230 = vmatpush2.bf16.msra.mxu0 0
    %231 = vmatprep.subr.bf16.mxu0 0
    %232 = vmatpush2.bf16.msra.mxu0 0
    %233 = vmatprep.subr.bf16.mxu0 0
    %234 = vmatpush2.bf16.msra.mxu0 0
    %235 = vmatprep.subr.bf16.mxu0 0
    %236 = vmatpush2.bf16.msra.mxu0 0
    %237 = vmatprep.subr.bf16.mxu0 0
    %238 = vmatpush2.bf16.msra.mxu0 0
    %239 = vmatprep.subr.bf16.mxu0 0
    %240 = vmatpush2.bf16.msra.mxu0 0
    %241 = vmatprep.subr.bf16.mxu0 0
    %242 = vmatpush2.bf16.msra.mxu0 0
    %243 = vmatprep.subr.bf16.mxu0 0
    %244 = vmatpush2.bf16.msra.mxu0 0
    %245 = vmatprep.mubr.bf16.mxu0 0
    %246 = vmatmul.mubr.bf16.gmra.mxu0 %v148
    %v247 = vpop.f32.mrf.mxu0
    %v248 = vadd.f32 0.0, %v247
    %v249 = vpop.f32.mrf.mxu0
    %v250 = vpop.f32.mrf.mxu0
    %v251 = vpop.f32.mrf.mxu0
    %252 = vdwg.mxu0
    %v253 = vmul.f32 %v248, 0.125
    %v254 = vpack.c.bf16 %v253, %v253
    %v255 = vld [vmem:[#allocation7] sm:$0xf]
    %v256 = vld [vmem:[#allocation7 + $0x4] sm:$0xf]
    %v257 = vld [vmem:[#allocation7 + $0x8] sm:$0xf]
    %v258 = vld [vmem:[#allocation7 + $0xc] sm:$0xf]
    %v259 = vld [vmem:[#allocation7 + $0x10] sm:$0xf]
    %v260 = vld [vmem:[#allocation7 + $0x14] sm:$0xf]
    %v261 = vld [vmem:[#allocation7 + $0x18] sm:$0xf]
    %v262 = vld [vmem:[#allocation7 + $0x1c] sm:$0xf]
    %v263 = vld [vmem:[#allocation7 + $0x20] sm:$0xf]
    %v264 = vld [vmem:[#allocation7 + $0x24] sm:$0xf]
    %v265 = vld [vmem:[#allocation7 + $0x28] sm:$0xf]
    %v266 = vld [vmem:[#allocation7 + $0x2c] sm:$0xf]
    %v267 = vld [vmem:[#allocation7 + $0x30] sm:$0xf]
    %v268 = vld [vmem:[#allocation7 + $0x34] sm:$0xf]
    %v269 = vld [vmem:[#allocation7 + $0x38] sm:$0xf]
    %v270 = vld [vmem:[#allocation7 + $0x3c] sm:$0xf]
    %v271 = vld [vmem:[%s3] sm:$0x1]
    %v273 = vlaneseq
    %v274 = vshrl.u32 %v273, 7
    %v275 = vsub.s32 0, %v274
    %v276 = vrot.slane %v271, %v275
    %v294 = vunpack.c.l.b16 %v255
    %v295 = vunpack.c.l.b16 %v256
    %v296 = vunpack.c.l.b16 %v257
    %v297 = vunpack.c.l.b16 %v258
    %v298 = vunpack.c.l.b16 %v259
    %v299 = vunpack.c.l.b16 %v260
    %v300 = vunpack.c.l.b16 %v261
    %v301 = vunpack.c.l.b16 %v262
    %v302 = vunpack.c.l.b16 %v263
    %v303 = vunpack.c.l.b16 %v264
    %v304 = vunpack.c.l.b16 %v265
    %v305 = vunpack.c.l.b16 %v266
    %v306 = vunpack.c.l.b16 %v267
    %v307 = vunpack.c.l.b16 %v268
    %v308 = vunpack.c.l.b16 %v269
    %v309 = vunpack.c.l.b16 %v270
    %v310 = vpack.c.b16 %v295, %v294
    %v311 = vpack.c.b16 %v297, %v296
    %v312 = vpack.c.b16 %v299, %v298
    %v313 = vpack.c.b16 %v301, %v300
    %v314 = vpack.c.b16 %v303, %v302
    %v315 = vpack.c.b16 %v305, %v304
    %v316 = vpack.c.b16 %v307, %v306
    %v317 = vpack.c.b16 %v309, %v308
    %326 = vmatprep.subr.bf16.mxu0 0
    %327 = vmatpush1.bf16.msra.mxu0 %v317
    %328 = vmatprep.subr.bf16.mxu0 0
    %329 = vmatpush1.bf16.msra.mxu0 %v316
    %330 = vmatprep.subr.bf16.mxu0 0
    %331 = vmatpush1.bf16.msra.mxu0 %v315
    %332 = vmatprep.subr.bf16.mxu0 0
    %333 = vmatpush1.bf16.msra.mxu0 %v314
    %334 = vmatprep.subr.bf16.mxu0 0
    %335 = vmatpush1.bf16.msra.mxu0 %v313
    %336 = vmatprep.subr.bf16.mxu0 0
    %337 = vmatpush1.bf16.msra.mxu0 %v312
    %338 = vmatprep.subr.bf16.mxu0 0
    %339 = vmatpush1.bf16.msra.mxu0 %v311
    %340 = vmatprep.subr.bf16.mxu0 0
    %341 = vmatpush1.bf16.msra.mxu0 %v310
    %342 = vmatprep.subr.bf16.mxu0 0
    %343 = vmatpush2.bf16.msra.mxu0 0
    %344 = vmatprep.subr.bf16.mxu0 0
    %345 = vmatpush2.bf16.msra.mxu0 0
    %346 = vmatprep.subr.bf16.mxu0 0
    %347 = vmatpush2.bf16.msra.mxu0 0
    %348 = vmatprep.subr.bf16.mxu0 0
    %349 = vmatpush2.bf16.msra.mxu0 0
    %350 = vmatprep.subr.bf16.mxu0 0
    %351 = vmatpush2.bf16.msra.mxu0 0
    %352 = vmatprep.subr.bf16.mxu0 0
    %353 = vmatpush2.bf16.msra.mxu0 0
    %354 = vmatprep.subr.bf16.mxu0 0
    %355 = vmatpush2.bf16.msra.mxu0 0
    %356 = vmatprep.subr.bf16.mxu0 0
    %357 = vmatpush2.bf16.msra.mxu0 0
    %358 = vmatprep.mubr.bf16.mxu0 0
    %359 = vmatmul.mubr.bf16.gmra.mxu0 %v254
    %v360 = vpop.f32.mrf.mxu0
    %v361 = vadd.f32 %v276, %v360
    %v362 = vpop.f32.mrf.mxu0
    %v363 = vpop.f32.mrf.mxu0
    %v364 = vpop.f32.mrf.mxu0
    %365 = vdwg.mxu0
    %v366 = vmax.f32 %v361, 0.0
    %v367 = vpack.c.bf16 %v366, %v366
    %v368 = vld [vmem:[#allocation8] sm:$0xf]
    %v369 = vld [vmem:[#allocation8 + $0x4] sm:$0xf]
    %v370 = vld [vmem:[#allocation8 + $0x8] sm:$0xf]
    %v371 = vld [vmem:[#allocation8 + $0xc] sm:$0xf]
    %v372 = vld [vmem:[#allocation8 + $0x10] sm:$0xf]
    %v373 = vld [vmem:[#allocation8 + $0x14] sm:$0xf]
    %v374 = vld [vmem:[#allocation8 + $0x18] sm:$0xf]
    %v375 = vld [vmem:[#allocation8 + $0x1c] sm:$0xf]
    %v376 = vld [vmem:[#allocation8 + $0x20] sm:$0xf]
    %v377 = vld [vmem:[#allocation8 + $0x24] sm:$0xf]
    %v378 = vld [vmem:[#allocation8 + $0x28] sm:$0xf]
    %v379 = vld [vmem:[#allocation8 + $0x2c] sm:$0xf]
    %v380 = vld [vmem:[#allocation8 + $0x30] sm:$0xf]
    %v381 = vld [vmem:[#allocation8 + $0x34] sm:$0xf]
    %v382 = vld [vmem:[#allocation8 + $0x38] sm:$0xf]
    %v383 = vld [vmem:[#allocation8 + $0x3c] sm:$0xf]
    %v384 = vld [vmem:[%s5] sm:$0x1]
    %v386 = vlaneseq
    %v387 = vshrl.u32 %v386, 7
    %v388 = vsub.s32 0, %v387
    %v389 = vrot.slane %v384, %v388
    %v407 = vunpack.c.l.b16 %v368
    %v408 = vunpack.c.l.b16 %v369
    %v409 = vunpack.c.l.b16 %v370
    %v410 = vunpack.c.l.b16 %v371
    %v411 = vunpack.c.l.b16 %v372
    %v412 = vunpack.c.l.b16 %v373
    %v413 = vunpack.c.l.b16 %v374
    %v414 = vunpack.c.l.b16 %v375
    %v415 = vunpack.c.l.b16 %v376
    %v416 = vunpack.c.l.b16 %v377
    %v417 = vunpack.c.l.b16 %v378
    %v418 = vunpack.c.l.b16 %v379
    %v419 = vunpack.c.l.b16 %v380
    %v420 = vunpack.c.l.b16 %v381
    %v421 = vunpack.c.l.b16 %v382
    %v422 = vunpack.c.l.b16 %v383
    %v423 = vpack.c.b16 %v408, %v407
    %v424 = vpack.c.b16 %v410, %v409
    %v425 = vpack.c.b16 %v412, %v411
    %v426 = vpack.c.b16 %v414, %v413
    %v427 = vpack.c.b16 %v416, %v415
    %v428 = vpack.c.b16 %v418, %v417
    %v429 = vpack.c.b16 %v420, %v419
    %v430 = vpack.c.b16 %v422, %v421
    %439 = vmatprep.subr.bf16.mxu0 0
    %440 = vmatpush1.bf16.msra.mxu0 %v430
    %441 = vmatprep.subr.bf16.mxu0 0
    %442 = vmatpush1.bf16.msra.mxu0 %v429
    %443 = vmatprep.subr.bf16.mxu0 0
    %444 = vmatpush1.bf16.msra.mxu0 %v428
    %445 = vmatprep.subr.bf16.mxu0 0
    %446 = vmatpush1.bf16.msra.mxu0 %v427
    %447 = vmatprep.subr.bf16.mxu0 0
    %448 = vmatpush1.bf16.msra.mxu0 %v426
    %449 = vmatprep.subr.bf16.mxu0 0
    %450 = vmatpush1.bf16.msra.mxu0 %v425
    %451 = vmatprep.subr.bf16.mxu0 0
    %452 = vmatpush1.bf16.msra.mxu0 %v424
    %453 = vmatprep.subr.bf16.mxu0 0
    %454 = vmatpush1.bf16.msra.mxu0 %v423
    %455 = vmatprep.subr.bf16.mxu0 0
    %456 = vmatpush2.bf16.msra.mxu0 0
    %457 = vmatprep.subr.bf16.mxu0 0
    %458 = vmatpush2.bf16.msra.mxu0 0
    %459 = vmatprep.subr.bf16.mxu0 0
    %460 = vmatpush2.bf16.msra.mxu0 0
    %461 = vmatprep.subr.bf16.mxu0 0
    %462 = vmatpush2.bf16.msra.mxu0 0
    %463 = vmatprep.subr.bf16.mxu0 0
    %464 = vmatpush2.bf16.msra.mxu0 0
    %465 = vmatprep.subr.bf16.mxu0 0
    %466 = vmatpush2.bf16.msra.mxu0 0
    %467 = vmatprep.subr.bf16.mxu0 0
    %468 = vmatpush2.bf16.msra.mxu0 0
    %469 = vmatprep.subr.bf16.mxu0 0
    %470 = vmatpush2.bf16.msra.mxu0 0
    %471 = vmatprep.mubr.bf16.mxu0 0
    %472 = vmatmul.mubr.bf16.gmra.mxu0 %v367
    %v473 = vpop.f32.mrf.mxu0
    %v474 = vadd.f32 %v389, %v473
    %v475 = vpop.f32.mrf.mxu0
    %v476 = vpop.f32.mrf.mxu0
    %v477 = vpop.f32.mrf.mxu0
    %478 = vdwg.mxu0
    %v479 = vmax.f32 %v474, 0.0
    %v480 = vpack.c.bf16 %v479, %v479
    %v481 = vld [vmem:[#allocation10] sm:$0xf]
    %v482 = vld [vmem:[#allocation10 + $0x4] sm:$0xf]
    %v483 = vld [vmem:[#allocation10 + $0x8] sm:$0xf]
    %v484 = vld [vmem:[#allocation10 + $0xc] sm:$0xf]
    %v485 = vld [vmem:[#allocation10 + $0x10] sm:$0xf]
    %v486 = vld [vmem:[#allocation10 + $0x14] sm:$0xf]
    %v487 = vld [vmem:[#allocation10 + $0x18] sm:$0xf]
    %v488 = vld [vmem:[#allocation10 + $0x1c] sm:$0xf]
    %v489 = vld [vmem:[#allocation10 + $0x20] sm:$0xf]
    %v490 = vld [vmem:[#allocation10 + $0x24] sm:$0xf]
    %v491 = vld [vmem:[#allocation10 + $0x28] sm:$0xf]
    %v492 = vld [vmem:[#allocation10 + $0x2c] sm:$0xf]
    %v493 = vld [vmem:[#allocation10 + $0x30] sm:$0xf]
    %v494 = vld [vmem:[#allocation10 + $0x34] sm:$0xf]
    %v495 = vld [vmem:[#allocation10 + $0x38] sm:$0xf]
    %v496 = vld [vmem:[#allocation10 + $0x3c] sm:$0xf]
    %v497 = vld [vmem:[%s7] sm:$0x1]
    %v499 = vlaneseq
    %v500 = vshrl.u32 %v499, 7
    %v501 = vsub.s32 0, %v500
    %v502 = vrot.slane %v497, %v501
    %v520 = vunpack.c.l.b16 %v481
    %v521 = vunpack.c.l.b16 %v482
    %v522 = vunpack.c.l.b16 %v483
    %v523 = vunpack.c.l.b16 %v484
    %v524 = vunpack.c.l.b16 %v485
    %v525 = vunpack.c.l.b16 %v486
    %v526 = vunpack.c.l.b16 %v487
    %v527 = vunpack.c.l.b16 %v488
    %v528 = vunpack.c.l.b16 %v489
    %v529 = vunpack.c.l.b16 %v490
    %v530 = vunpack.c.l.b16 %v491
    %v531 = vunpack.c.l.b16 %v492
    %v532 = vunpack.c.l.b16 %v493
    %v533 = vunpack.c.l.b16 %v494
    %v534 = vunpack.c.l.b16 %v495
    %v535 = vunpack.c.l.b16 %v496
    %v536 = vpack.c.b16 %v521, %v520
    %v537 = vpack.c.b16 %v523, %v522
    %v538 = vpack.c.b16 %v525, %v524
    %v539 = vpack.c.b16 %v527, %v526
    %v540 = vpack.c.b16 %v529, %v528
    %v541 = vpack.c.b16 %v531, %v530
    %v542 = vpack.c.b16 %v533, %v532
    %v543 = vpack.c.b16 %v535, %v534
    %552 = vmatprep.subr.bf16.mxu0 0
    %553 = vmatpush1.bf16.msra.mxu0 %v543
    %554 = vmatprep.subr.bf16.mxu0 0
    %555 = vmatpush1.bf16.msra.mxu0 %v542
    %556 = vmatprep.subr.bf16.mxu0 0
    %557 = vmatpush1.bf16.msra.mxu0 %v541
    %558 = vmatprep.subr.bf16.mxu0 0
    %559 = vmatpush1.bf16.msra.mxu0 %v540
    %560 = vmatprep.subr.bf16.mxu0 0
    %561 = vmatpush1.bf16.msra.mxu0 %v539
    %562 = vmatprep.subr.bf16.mxu0 0
    %563 = vmatpush1.bf16.msra.mxu0 %v538
    %564 = vmatprep.subr.bf16.mxu0 0
    %565 = vmatpush1.bf16.msra.mxu0 %v537
    %566 = vmatprep.subr.bf16.mxu0 0
    %567 = vmatpush1.bf16.msra.mxu0 %v536
    %568 = vmatprep.subr.bf16.mxu0 0
    %569 = vmatpush2.bf16.msra.mxu0 0
    %570 = vmatprep.subr.bf16.mxu0 0
    %571 = vmatpush2.bf16.msra.mxu0 0
    %572 = vmatprep.subr.bf16.mxu0 0
    %573 = vmatpush2.bf16.msra.mxu0 0
    %574 = vmatprep.subr.bf16.mxu0 0
    %575 = vmatpush2.bf16.msra.mxu0 0
    %576 = vmatprep.subr.bf16.mxu0 0
    %577 = vmatpush2.bf16.msra.mxu0 0
    %578 = vmatprep.subr.bf16.mxu0 0
    %579 = vmatpush2.bf16.msra.mxu0 0
    %580 = vmatprep.subr.bf16.mxu0 0
    %581 = vmatpush2.bf16.msra.mxu0 0
    %582 = vmatprep.subr.bf16.mxu0 0
    %583 = vmatpush2.bf16.msra.mxu0 0
    %584 = vmatprep.mubr.bf16.mxu0 0
    %585 = vmatmul.mubr.bf16.gmra.mxu0 %v480
    %v586 = vpop.f32.mrf.mxu0
    %v587 = vadd.f32 %v502, %v586
    %v588 = vpop.f32.mrf.mxu0
    %v589 = vpop.f32.mrf.mxu0
    %v590 = vpop.f32.mrf.mxu0
    %591 = vdwg.mxu0
    %592 = vst [vmem:[#allocation11] sm:$0xff] %v587
    // Predicated region
    $region54: #{tpu_custom_call.1} parent=1 // pred_check
      _
    $region55: #{tpu_custom_call.1} parent=1 // pred_check_branch
      %594 = sbr.rel (0) target = $region57
    $region56: #{tpu_custom_call.1} parent=1 // pred_region
      %s596 = ssub.s32 128, 128
      %597 = vsyncadd [#allocation4], %s596
      %s599 = sshll.u32 [#allocation11], 4
      %s600 = int_to_ptr.vmem [resolvable:$true] %s599
      %602 = dma.vmem_to_hbm [thread:$0]  %s600, 128, %s8, [#allocation4]
    $region57: #{tpu_custom_call.1} parent=1 // pred_fallthru
      _
    // Predicated region
    $region58: #{tpu_custom_call.1} parent=1 // pred_check
      _
    $region59: #{tpu_custom_call.1} parent=1 // pred_check_branch
      %604 = sbr.rel (0) target = $region61
    $region60: #{tpu_custom_call.1} parent=1 // pred_region
      %605 = dma.done [#allocation4], 128
    $region61: #{tpu_custom_call.1} parent=1 // pred_fallthru
      _
    %606 = vsyncpa [#allocation3], 1
    %607 = vsyncpa [#allocation6], 1
    %608 = vsyncpa [#allocation9], 1
    %609 = vsyncpa [#allocation4], 1

</llo_original>
